<compile_context>
chip_gen: v5e
topology: v5e:2x2
jax: 0.10.0
libtpu: 0.0.40
codegen_flags: <defaults>
</compile_context>

<pallas_src>
import functools
import math

import jax
import jax.numpy as jnp
from jax.experimental import pallas as pl
from jax.experimental.pallas import tpu as pltpu

_LANES = 128
# Per input, per pipeline buffer. 2 inputs x 2 buffers x 4 MiB = 16 MiB,
# inside the 32 MiB scoped-VMEM limit we request below (OK on v5e/v6e/v7x).
_DEFAULT_TILE_BYTES = 4 * 1024 * 1024


def _iou_kernel(p_ref, t_ref, iand_ref, st_ref, sp_ref, *,
                tile_cols, chw, npc, needs_mask):
    """One (B, tile_cols) chunk: accumulate per-sample sum(t*p), sum(t), sum(p)."""
    j = pl.program_id(1)

    @pl.when(j == 0)
    def _init():
        iand_ref[...] = jnp.zeros_like(iand_ref)
        st_ref[...] = jnp.zeros_like(st_ref)
        sp_ref[...] = jnp.zeros_like(sp_ref)

    p = p_ref[...].astype(jnp.float32)
    t = t_ref[...].astype(jnp.float32)

    if needs_mask:
        # Flat-column mask: zero out columns past CHW (ragged tail of the last
        # real chunk, or a fully out-of-range chunk of an uneven split).
        s = pl.program_id(0)
        base = (s * npc + j) * tile_cols
        col = jax.lax.broadcasted_iota(jnp.int32, p.shape, 1)
        valid = col < (chw - base)
        p = jnp.where(valid, p, 0.0)
        t = jnp.where(valid, t, 0.0)

    # Per-sample row reductions (VPU adds + one small XLU reduce per chunk,
    # fully hidden under the HBM DMA).
    iand_ref[0] += jnp.sum(t * p, axis=1, keepdims=True)
    st_ref[0] += jnp.sum(t, axis=1, keepdims=True)
    sp_ref[0] += jnp.sum(p, axis=1, keepdims=True)


def iou_loss(pred, target, *, max_tile_bytes=_DEFAULT_TILE_BYTES):
    """Pallas implementation of the PyTorch `_iou(pred, target)` forward."""
    assert pred.shape == target.shape
    B = pred.shape[0]
    chw = math.prod(pred.shape[1:])

    # Free layout plumbing: contiguous reshape only, NO padding / HBM copy.
    p2 = pred.reshape(B, chw)
    t2 = target.reshape(B, chw)

    itemsize = max(jnp.dtype(pred.dtype).itemsize, jnp.dtype(target.dtype).itemsize)
    budget_elems = max(max_tile_bytes // itemsize, _LANES)
    tile_cols = max((budget_elems // max(B, 1)) // _LANES * _LANES, _LANES)
    if tile_cols >= chw:
        # One full-width chunk: block last dim equals the array dim, so no
        # lane padding and no tail mask are needed at all.
        tile_cols = chw
    n_chunks = pl.cdiv(chw, tile_cols)
    # Leading parallel split over the feature-chunk axis so both TensorCores
    # (v7x megacore) have work even at B == 1.
    n_splits = 2 if n_chunks >= 2 else 1
    npc = pl.cdiv(n_chunks, n_splits)          # chunks per split
    needs_mask = (chw % tile_cols != 0) or (npc * n_splits != n_chunks)

    def in_map(s, j):
        # Clamp so an (all-masked) out-of-range chunk re-reads a valid block.
        return (0, jnp.minimum(s * npc + j, n_chunks - 1))

    def out_map(s, j):
        return (s, 0, 0)

    kernel = functools.partial(
        _iou_kernel, tile_cols=tile_cols, chw=chw, npc=npc, needs_mask=needs_mask)

    out_sds = jax.ShapeDtypeStruct((n_splits, B, 1), jnp.float32)
    out_spec = pl.BlockSpec((1, B, 1), out_map)

    iand_p, st_p, sp_p = pl.pallas_call(
        kernel,
        out_shape=(out_sds, out_sds, out_sds),
        grid_spec=pltpu.PrefetchScalarGridSpec(
            num_scalar_prefetch=0,
            grid=(n_splits, npc),
            in_specs=[
                pl.BlockSpec((B, tile_cols), in_map),
                pl.BlockSpec((B, tile_cols), in_map),
            ],
            out_specs=(out_spec, out_spec, out_spec),
        ),
        compiler_params=pltpu.CompilerParams(
            dimension_semantics=("parallel", "arbitrary"),
            vmem_limit_bytes=32 * 1024 * 1024,
        ),
        cost_estimate=pl.CostEstimate(
            flops=4 * B * chw,
            transcendentals=0,
            bytes_accessed=2 * B * chw * itemsize + 3 * n_splits * B * 4,
        ),
    )(p2, t2)

    # Tiny finalize in plain JAX: combine splits, divide, mean over batch.
    iand = jnp.sum(iand_p, axis=(0, 2))
    s_t = jnp.sum(st_p, axis=(0, 2))
    s_p = jnp.sum(sp_p, axis=(0, 2))
    ior = s_t + s_p - iand
    # Same division-by-zero behavior as the PyTorch reference (no epsilon).
    return jnp.mean(1.0 - iand / ior)


def _iou_reference(pred, target):
    axes = tuple(range(1, pred.ndim))
    iand = jnp.sum(target * pred, axis=axes)
    ior = jnp.sum(target, axis=axes) + jnp.sum(pred, axis=axes) - iand
    return jnp.mean(1.0 - iand / ior)


if __name__ == "__main__":
    key = jax.random.PRNGKey(0)
    k1, k2, k3, k4 = jax.random.split(key, 4)

    # Case 1: small shape implied by the module (aligned, single chunk).
    B, C, H, W = 2, 4, 16, 16
    pred = jax.random.uniform(k1, (B, C, H, W), dtype=jnp.float32)
    target = (jax.random.uniform(k2, (B, C, H, W)) > 0.5).astype(jnp.float32)

    loss = jax.jit(iou_loss)(pred, target)
    jax.block_until_ready(loss)
    ref = _iou_reference(pred, target)
    assert jnp.allclose(loss, ref, rtol=1e-5, atol=1e-5), (loss, ref)

    # Case 2: ragged CHW + tiny tile budget to exercise the masked tail,
    # multi-chunk accumulation and the parallel feature split.
    B2, C2, H2, W2 = 3, 3, 17, 13
    pred2 = jax.random.uniform(k3, (B2, C2, H2, W2), dtype=jnp.float32)
    target2 = (jax.random.uniform(k4, (B2, C2, H2, W2)) > 0.5).astype(jnp.float32)

    loss2 = jax.jit(functools.partial(iou_loss, max_tile_bytes=4096))(pred2, target2)
    jax.block_until_ready(loss2)
    ref2 = _iou_reference(pred2, target2)
    assert jnp.allclose(loss2, ref2, rtol=1e-5, atol=1e-5), (loss2, ref2)

    print("KERNEL_OK")
</pallas_src>

<mosaic_0001>
module attributes {stable_mosaic.version = 11 : i64} {
  func.func @_iou_kernel(%arg0: i32, %arg1: i32, %arg2: memref<2x1024xf32, #tpu.memory_space<vmem>>, %arg3: memref<2x1024xf32, #tpu.memory_space<vmem>>, %arg4: memref<1x2x1xf32, #tpu.memory_space<vmem>>, %arg5: memref<1x2x1xf32, #tpu.memory_space<vmem>>, %arg6: memref<1x2x1xf32, #tpu.memory_space<vmem>>) attributes {dimension_semantics = [#tpu.dimension_semantics<parallel>, #tpu.dimension_semantics<arbitrary>], iteration_bounds = array<i64: 1, 1>, scalar_prefetch = 0 : i64, scratch_operands = 0 : i64, tpu.core_type = #tpu.core_type<tc>, window_params = [{transform_indices = @transform_0, window_bounds = array<i64: 2, 1024>}, {transform_indices = @transform_1, window_bounds = array<i64: 2, 1024>}, {transform_indices = @transform_2, window_bounds = array<i64: 1, 2, 1>}, {transform_indices = @transform_3, window_bounds = array<i64: 1, 2, 1>}, {transform_indices = @transform_4, window_bounds = array<i64: 1, 2, 1>}]} {
    %c0_i32 = arith.constant 0 : i32
    %0 = arith.cmpi eq, %arg1, %c0_i32 : i32
    %1 = arith.extui %0 : i1 to i32
    %c0_i32_0 = arith.constant 0 : i32
    %2 = arith.cmpi ne, %1, %c0_i32_0 : i32
    scf.if %2 {
      %cst_24 = arith.constant 0.000000e+00 : f32
      %30 = vector.broadcast %cst_24 : f32 to vector<1x2x1xf32>
      %c0_25 = arith.constant 0 : index
      %c0_26 = arith.constant 0 : index
      %c0_27 = arith.constant 0 : index
      %31 = vector.load %arg4[%c0_25, %c0_26, %c0_27] : memref<1x2x1xf32, #tpu.memory_space<vmem>>, vector<1x2x1xf32>
      tpu.vector_store %arg4[%c0_25, %c0_26, %c0_27], %30 {strides = array<i32>} : memref<1x2x1xf32, #tpu.memory_space<vmem>>, vector<1x2x1xf32>,
      %cst_28 = arith.constant 0.000000e+00 : f32
      %32 = vector.broadcast %cst_28 : f32 to vector<1x2x1xf32>
      %c0_29 = arith.constant 0 : index
      %c0_30 = arith.constant 0 : index
      %c0_31 = arith.constant 0 : index
      %33 = vector.load %arg5[%c0_29, %c0_30, %c0_31] : memref<1x2x1xf32, #tpu.memory_space<vmem>>, vector<1x2x1xf32>
      tpu.vector_store %arg5[%c0_29, %c0_30, %c0_31], %32 {strides = array<i32>} : memref<1x2x1xf32, #tpu.memory_space<vmem>>, vector<1x2x1xf32>,
      %cst_32 = arith.constant 0.000000e+00 : f32
      %34 = vector.broadcast %cst_32 : f32 to vector<1x2x1xf32>
      %c0_33 = arith.constant 0 : index
      %c0_34 = arith.constant 0 : index
      %c0_35 = arith.constant 0 : index
      %35 = vector.load %arg6[%c0_33, %c0_34, %c0_35] : memref<1x2x1xf32, #tpu.memory_space<vmem>>, vector<1x2x1xf32>
      tpu.vector_store %arg6[%c0_33, %c0_34, %c0_35], %34 {strides = array<i32>} : memref<1x2x1xf32, #tpu.memory_space<vmem>>, vector<1x2x1xf32>,
    } else {
    }
    %c0 = arith.constant 0 : index
    %c0_1 = arith.constant 0 : index
    %3 = vector.load %arg2[%c0, %c0_1] : memref<2x1024xf32, #tpu.memory_space<vmem>>, vector<2x1024xf32>
    %c0_2 = arith.constant 0 : index
    %c0_3 = arith.constant 0 : index
    %4 = vector.load %arg3[%c0_2, %c0_3] : memref<2x1024xf32, #tpu.memory_space<vmem>>, vector<2x1024xf32>
    %c0_4 = arith.constant 0 : index
    %c0_5 = arith.constant 0 : index
    %c0_6 = arith.constant 0 : index
    %5 = vector.load %arg4[%c0_4, %c0_5, %c0_6] : memref<1x2x1xf32, #tpu.memory_space<vmem>>, vector<1x2x1xf32>
    %6 = vector.shape_cast %5 : vector<1x2x1xf32> to vector<2x1xf32>
    %7 = arith.mulf %4, %3 : vector<2x1024xf32>
    %cst = arith.constant dense<0.000000e+00> : vector<2xf32>
    %8 = vector.multi_reduction <add>, %7, %cst [1] : vector<2x1024xf32> to vector<2xf32>
    %9 = vector.shape_cast %8 : vector<2xf32> to vector<2x1xf32>
    %10 = arith.addf %6, %9 : vector<2x1xf32>
    %c0_7 = arith.constant 0 : index
    %c0_8 = arith.constant 0 : index
    %c0_9 = arith.constant 0 : index
    %11 = vector.load %arg4[%c0_7, %c0_8, %c0_9] : memref<1x2x1xf32, #tpu.memory_space<vmem>>, vector<1x2x1xf32>
    %12 = vector.shape_cast %11 : vector<1x2x1xf32> to vector<2x1xf32>
    %13 = vector.shape_cast %10 : vector<2x1xf32> to vector<1x2x1xf32>
    tpu.vector_store %arg4[%c0_7, %c0_8, %c0_9], %13 {strides = array<i32>} : memref<1x2x1xf32, #tpu.memory_space<vmem>>, vector<1x2x1xf32>,
    %c0_10 = arith.constant 0 : index
    %c0_11 = arith.constant 0 : index
    %c0_12 = arith.constant 0 : index
    %14 = vector.load %arg5[%c0_10, %c0_11, %c0_12] : memref<1x2x1xf32, #tpu.memory_space<vmem>>, vector<1x2x1xf32>
    %15 = vector.shape_cast %14 : vector<1x2x1xf32> to vector<2x1xf32>
    %cst_13 = arith.constant dense<0.000000e+00> : vector<2xf32>
    %16 = vector.multi_reduction <add>, %4, %cst_13 [1] : vector<2x1024xf32> to vector<2xf32>
    %17 = vector.shape_cast %16 : vector<2xf32> to vector<2x1xf32>
    %18 = arith.addf %15, %17 : vector<2x1xf32>
    %c0_14 = arith.constant 0 : index
    %c0_15 = arith.constant 0 : index
    %c0_16 = arith.constant 0 : index
    %19 = vector.load %arg5[%c0_14, %c0_15, %c0_16] : memref<1x2x1xf32, #tpu.memory_space<vmem>>, vector<1x2x1xf32>
    %20 = vector.shape_cast %19 : vector<1x2x1xf32> to vector<2x1xf32>
    %21 = vector.shape_cast %18 : vector<2x1xf32> to vector<1x2x1xf32>
    tpu.vector_store %arg5[%c0_14, %c0_15, %c0_16], %21 {strides = array<i32>} : memref<1x2x1xf32, #tpu.memory_space<vmem>>, vector<1x2x1xf32>,
    %c0_17 = arith.constant 0 : index
    %c0_18 = arith.constant 0 : index
    %c0_19 = arith.constant 0 : index
    %22 = vector.load %arg6[%c0_17, %c0_18, %c0_19] : memref<1x2x1xf32, #tpu.memory_space<vmem>>, vector<1x2x1xf32>
    %23 = vector.shape_cast %22 : vector<1x2x1xf32> to vector<2x1xf32>
    %cst_20 = arith.constant dense<0.000000e+00> : vector<2xf32>
    %24 = vector.multi_reduction <add>, %3, %cst_20 [1] : vector<2x1024xf32> to vector<2xf32>
    %25 = vector.shape_cast %24 : vector<2xf32> to vector<2x1xf32>
    %26 = arith.addf %23, %25 : vector<2x1xf32>
    %c0_21 = arith.constant 0 : index
    %c0_22 = arith.constant 0 : index
    %c0_23 = arith.constant 0 : index
    %27 = vector.load %arg6[%c0_21, %c0_22, %c0_23] : memref<1x2x1xf32, #tpu.memory_space<vmem>>, vector<1x2x1xf32>
    %28 = vector.shape_cast %27 : vector<1x2x1xf32> to vector<2x1xf32>
    %29 = vector.shape_cast %26 : vector<2x1xf32> to vector<1x2x1xf32>
    tpu.vector_store %arg6[%c0_21, %c0_22, %c0_23], %29 {strides = array<i32>} : memref<1x2x1xf32, #tpu.memory_space<vmem>>, vector<1x2x1xf32>,
    return
  }
  func.func @transform_0(%arg0: i32, %arg1: i32) -> (i32, i32) {
    %c1_i32 = arith.constant 1 : i32
    %0 = arith.muli %arg0, %c1_i32 : i32
    %1 = arith.addi %0, %arg1 : i32
    %c0_i32 = arith.constant 0 : i32
    %2 = arith.minsi %1, %c0_i32 : i32
    %c0_i32_0 = arith.constant 0 : i32
    %c0_i32_1 = arith.constant 0 : i32
    return %c0_i32_0, %2 : i32, i32
  }
  func.func @transform_1(%arg0: i32, %arg1: i32) -> (i32, i32) {
    %c1_i32 = arith.constant 1 : i32
    %0 = arith.muli %arg0, %c1_i32 : i32
    %1 = arith.addi %0, %arg1 : i32
    %c0_i32 = arith.constant 0 : i32
    %2 = arith.minsi %1, %c0_i32 : i32
    %c0_i32_0 = arith.constant 0 : i32
    %c0_i32_1 = arith.constant 0 : i32
    return %c0_i32_0, %2 : i32, i32
  }
  func.func @transform_2(%arg0: i32, %arg1: i32) -> (i32, i32, i32) {
    %c0_i32 = arith.constant 0 : i32
    %c0_i32_0 = arith.constant 0 : i32
    %c0_i32_1 = arith.constant 0 : i32
    return %arg0, %c0_i32, %c0_i32_0 : i32, i32, i32
  }
  func.func @transform_3(%arg0: i32, %arg1: i32) -> (i32, i32, i32) {
    %c0_i32 = arith.constant 0 : i32
    %c0_i32_0 = arith.constant 0 : i32
    %c0_i32_1 = arith.constant 0 : i32
    return %arg0, %c0_i32, %c0_i32_0 : i32, i32, i32
  }
  func.func @transform_4(%arg0: i32, %arg1: i32) -> (i32, i32, i32) {
    %c0_i32 = arith.constant 0 : i32
    %c0_i32_0 = arith.constant 0 : i32
    %c0_i32_1 = arith.constant 0 : i32
    return %arg0, %c0_i32, %c0_i32_0 : i32, i32, i32
  }
}

</mosaic_0001>

<llo_original>
// kernel: iou_loss.1
$region0: #{iou_loss.1}
  #allocation0 [shape = 'u32[]', space=smem, size = 0x4, offset = 0x4, fixed_abs, tag = 'smem constant byte address 0x4 - core index']
  #allocation1 [shape = 'u32[72,128]{1,0:T(1,128)}', space=vmem, size = 0x9000, scoped, tag = 'internal scratch']
  %s0 = inlined_call_operand.vmem [shape: f32[2,1024], index: 0, kind: input, shape index: {}]
  %s1 = inlined_call_operand.vmem [shape: f32[2,1024], index: 1, kind: input, shape index: {}]
  %s2 = inlined_call_operand.vmem [shape: f32[1,2,1], index: 2, kind: output, shape index: {0}]
  %s3 = inlined_call_operand.vmem [shape: f32[1,2,1], index: 3, kind: output, shape index: {1}]
  %s4 = inlined_call_operand.vmem [shape: f32[1,2,1], index: 4, kind: output, shape index: {2}]
  %5 = xla_tuple %s2, %s3, %s4
  %s6 = sld [smem:[#allocation0]]
  $region38: #{iou_loss.1} parent=0
    _
  %s8 = ssub.s32 1, %s6
  %s9 = scalar_select 0, %s8, %s6
  // Predicated region
  $region2: #{iou_loss.1} parent=0 // pred_check
    _
  $region3: #{iou_loss.1} parent=0 // pred_check_branch
    %11 = sbr.rel (0) target = $region5
  $region4: #{iou_loss.1} parent=0 // pred_region
    %s12 = sadd.s32 0, 0
    %p13 = scmp.lt.s32.totalorder %s12, 0
    %s14 = scalar_select %p13, %s12, 0
    %s15 = smul.u32 8, %s14
    %p16 = scmp.lt.s32.totalorder %s15, 7
    %s17 = scalar_select %p16, %s15, 7
    %s18 = smul.addr %s17, 2
    %s19 = scalar_lea.vmem %s0, %s18
    %s20 = sadd.s32 0, 0
    %p21 = scmp.lt.s32.totalorder %s20, 0
    %s22 = scalar_select %p21, %s20, 0
    %s23 = smul.u32 8, %s22
  $region5: #{iou_loss.1} parent=0 // pred_fallthru
    _
  // Predicated region
  $region6: #{iou_loss.1} parent=0 // pred_check
    _
  $region7: #{iou_loss.1} parent=0 // pred_check_branch
    %25 = sbr.rel (0) target = $region9
  $region8: #{iou_loss.1} parent=0 // pred_region
    %s26 = sadd.s32 0, 0
    %p27 = scmp.lt.s32.totalorder %s26, 0
    %s28 = scalar_select %p27, %s26, 0
    %s29 = smul.u32 8, %s28
    %p30 = scmp.lt.s32.totalorder %s29, 7
    %s31 = scalar_select %p30, %s29, 7
    %s32 = smul.addr %s31, 2
    %s33 = scalar_lea.vmem %s1, %s32
    %s34 = sadd.s32 0, 0
    %p35 = scmp.lt.s32.totalorder %s34, 0
    %s36 = scalar_select %p35, %s34, 0
    %s37 = smul.u32 8, %s36
  $region9: #{iou_loss.1} parent=0 // pred_fallthru
    _
  %s38 = sadd.s32 0, 0
  %p39 = scmp.lt.s32.totalorder %s38, 0
  %s40 = scalar_select %p39, %s38, 0
  %s41 = smul.u32 8, %s40
  %p42 = scmp.lt.s32.totalorder %s41, 7
  %s43 = scalar_select %p42, %s41, 7
  %s44 = smul.addr %s43, 2
  %s45 = scalar_lea.vmem %s0, %s44
  %s46 = sadd.s32 0, 0
  %p47 = scmp.lt.s32.totalorder %s46, 0
  %s48 = scalar_select %p47, %s46, 0
  %s49 = smul.u32 8, %s48
  %p50 = scmp.lt.s32.totalorder %s49, 7
  %s51 = scalar_select %p50, %s49, 7
  %s52 = smul.addr %s51, 2
  %s53 = scalar_lea.vmem %s1, %s52
  %s54 = sadd.s32 0, 0
  %p55 = scmp.lt.s32.totalorder %s54, 0
  %s56 = scalar_select %p55, %s54, 0
  %s57 = smul.u32 8, %s56
  %p58 = scmp.lt.s32.totalorder %s57, 7
  %s59 = scalar_select %p58, %s57, 7
  %s60 = smul.addr %s59, 2
  %s61 = scalar_lea.vmem %s0, %s60
  %s62 = sadd.s32 0, 0
  %p63 = scmp.lt.s32.totalorder %s62, 0
  %s64 = scalar_select %p63, %s62, 0
  %s65 = smul.u32 8, %s64
  %s66 = sadd.s32 0, 0
  %p67 = scmp.lt.s32.totalorder %s66, 0
  %s68 = scalar_select %p67, %s66, 0
  %s69 = smul.u32 8, %s68
  %p70 = scmp.lt.s32.totalorder %s69, 7
  %s71 = scalar_select %p70, %s69, 7
  %s72 = smul.addr %s71, 2
  %s73 = scalar_lea.vmem %s1, %s72
  %s74 = sadd.s32 0, 0
  %p75 = scmp.lt.s32.totalorder %s74, 0
  %s76 = scalar_select %p75, %s74, 0
  %s77 = smul.u32 8, %s76
  %p78 = scmp.eq.s32.totalorder 0, 0
  // Predicated region
  $region10: #{iou_loss.1} parent=0 // pred_check
    %p79 = pneg %p78
  $region11: #{iou_loss.1} parent=0 // pred_check_branch
    %81 = sbr.rel (%p79) target = $region13
  $region12: #{iou_loss.1} parent=0 // pred_region
    %vm82 = vcmask 1024
    %83 = vst.msk [vmem:[%s2] sm:$0x3] %vm82, 0.0
    %84 = vst.msk [vmem:[%s3] sm:$0x3] %vm82, 0.0
    %85 = vst.msk [vmem:[%s4] sm:$0x3] %vm82, 0.0
  $region13: #{iou_loss.1} parent=0 // pred_fallthru
    _
  %v86 = vld [vmem:[%s61] sm:$0xff]
  %v87 = vld [vmem:[%s61 + $0x8] sm:$0xff]
  %v88 = vld [vmem:[%s73] sm:$0xff]
  %v89 = vld [vmem:[%s73 + $0x8] sm:$0xff]
  %v90 = vld [vmem:[%s2] sm:$0x3]
  %v91 = vmul.f32 %v88, %v86
  %v92 = vmul.f32 %v89, %v87
  %95 = vst [vmem:[#allocation1] ss:$4 sm:$0xff] %v91
  %s96 = scalar_lea.vmem [#allocation1], 32
  %97 = vst [vmem:[%s96] ss:$4 sm:$0xff] %v92
  %v98 = vld.sshfl [vmem:[#allocation1] sm:$0xff pattern:$0x73625140]
  %v99 = vld.sshfl [vmem:[#allocation1 + $0x8] sm:$0xff pattern:$0x73625140]
  %v100 = vld.sshfl [vmem:[#allocation1 + $0x10] sm:$0xff pattern:$0x73625140]
  %v101 = vld.sshfl [vmem:[#allocation1 + $0x18] sm:$0xff pattern:$0x73625140]
  %v102 = vld.sshfl [vmem:[#allocation1 + $0x20] sm:$0xff pattern:$0x73625140]
  %v103 = vld.sshfl [vmem:[#allocation1 + $0x28] sm:$0xff pattern:$0x73625140]
  %v104 = vld.sshfl [vmem:[#allocation1 + $0x30] sm:$0xff pattern:$0x73625140]
  %v105 = vld.sshfl [vmem:[#allocation1 + $0x38] sm:$0xff pattern:$0x73625140]
  %vm114 = vcmask 1041408
  %v115 = vsel %vm114, %v98, 0.0
  %v116 = vsel %vm114, %v99, 0.0
  %v117 = vadd.f32 %v115, %v116
  %v118 = vsel %vm114, %v100, 0.0
  %v119 = vadd.f32 %v117, %v118
  %v120 = vsel %vm114, %v101, 0.0
  %v121 = vadd.f32 %v119, %v120
  %v122 = vsel %vm114, %v102, 0.0
  %v123 = vadd.f32 %v121, %v122
  %v124 = vsel %vm114, %v103, 0.0
  %v125 = vadd.f32 %v123, %v124
  %v126 = vsel %vm114, %v104, 0.0
  %v127 = vadd.f32 %v125, %v126
  %v128 = vsel %vm114, %v105, 0.0
  %v129 = vadd.f32 %v127, %v128
  %130 = vadd.xlane.f32.xlu0 %v129
  %v131 = vpop.xlane.xlu0 %130
  %v132 = vadd.f32 %v90, %v131
  %vm133 = vcmask 1024
  %134 = vst.msk [vmem:[%s2] sm:$0x3] %vm133, %v132
  %v135 = vld [vmem:[%s3] sm:$0x3]
  %138 = vst [vmem:[#allocation1] ss:$4 sm:$0xff] %v88
  %s139 = scalar_lea.vmem [#allocation1], 32
  %140 = vst [vmem:[%s139] ss:$4 sm:$0xff] %v89
  %v141 = vld.sshfl [vmem:[#allocation1] sm:$0xff pattern:$0x73625140]
  %v142 = vld.sshfl [vmem:[#allocation1 + $0x8] sm:$0xff pattern:$0x73625140]
  %v143 = vld.sshfl [vmem:[#allocation1 + $0x10] sm:$0xff pattern:$0x73625140]
  %v144 = vld.sshfl [vmem:[#allocation1 + $0x18] sm:$0xff pattern:$0x73625140]
  %v145 = vld.sshfl [vmem:[#allocation1 + $0x20] sm:$0xff pattern:$0x73625140]
  %v146 = vld.sshfl [vmem:[#allocation1 + $0x28] sm:$0xff pattern:$0x73625140]
  %v147 = vld.sshfl [vmem:[#allocation1 + $0x30] sm:$0xff pattern:$0x73625140]
  %v148 = vld.sshfl [vmem:[#allocation1 + $0x38] sm:$0xff pattern:$0x73625140]
  %v157 = vsel %vm114, %v141, 0.0
  %v158 = vsel %vm114, %v142, 0.0
  %v159 = vadd.f32 %v157, %v158
  %v160 = vsel %vm114, %v143, 0.0
  %v161 = vadd.f32 %v159, %v160
  %v162 = vsel %vm114, %v144, 0.0
  %v163 = vadd.f32 %v161, %v162
  %v164 = vsel %vm114, %v145, 0.0
  %v165 = vadd.f32 %v163, %v164
  %v166 = vsel %vm114, %v146, 0.0
  %v167 = vadd.f32 %v165, %v166
  %v168 = vsel %vm114, %v147, 0.0
  %v169 = vadd.f32 %v167, %v168
  %v170 = vsel %vm114, %v148, 0.0
  %v171 = vadd.f32 %v169, %v170
  %172 = vadd.xlane.f32.xlu0 %v171
  %v173 = vpop.xlane.xlu0 %172
  %v174 = vadd.f32 %v135, %v173
  %175 = vst.msk [vmem:[%s3] sm:$0x3] %vm133, %v174
  %v176 = vld [vmem:[%s4] sm:$0x3]
  %179 = vst [vmem:[#allocation1] ss:$4 sm:$0xff] %v86
  %s180 = scalar_lea.vmem [#allocation1], 32
  %181 = vst [vmem:[%s180] ss:$4 sm:$0xff] %v87
  %v182 = vld.sshfl [vmem:[#allocation1] sm:$0xff pattern:$0x73625140]
  %v183 = vld.sshfl [vmem:[#allocation1 + $0x8] sm:$0xff pattern:$0x73625140]
  %v184 = vld.sshfl [vmem:[#allocation1 + $0x10] sm:$0xff pattern:$0x73625140]
  %v185 = vld.sshfl [vmem:[#allocation1 + $0x18] sm:$0xff pattern:$0x73625140]
  %v186 = vld.sshfl [vmem:[#allocation1 + $0x20] sm:$0xff pattern:$0x73625140]
  %v187 = vld.sshfl [vmem:[#allocation1 + $0x28] sm:$0xff pattern:$0x73625140]
  %v188 = vld.sshfl [vmem:[#allocation1 + $0x30] sm:$0xff pattern:$0x73625140]
  %v189 = vld.sshfl [vmem:[#allocation1 + $0x38] sm:$0xff pattern:$0x73625140]
  %v198 = vsel %vm114, %v182, 0.0
  %v199 = vsel %vm114, %v183, 0.0
  %v200 = vadd.f32 %v198, %v199
  %v201 = vsel %vm114, %v184, 0.0
  %v202 = vadd.f32 %v200, %v201
  %v203 = vsel %vm114, %v185, 0.0
  %v204 = vadd.f32 %v202, %v203
  %v205 = vsel %vm114, %v186, 0.0
  %v206 = vadd.f32 %v204, %v205
  %v207 = vsel %vm114, %v187, 0.0
  %v208 = vadd.f32 %v206, %v207
  %v209 = vsel %vm114, %v188, 0.0
  %v210 = vadd.f32 %v208, %v209
  %v211 = vsel %vm114, %v189, 0.0
  %v212 = vadd.f32 %v210, %v211
  %213 = vadd.xlane.f32.xlu0 %v212
  %v214 = vpop.xlane.xlu0 %213
  %v215 = vadd.f32 %v176, %v214
  %216 = vst.msk [vmem:[%s4] sm:$0x3] %vm133, %v215
  // Predicated region
  $region14: #{iou_loss.1} parent=0 // pred_check
    _
  $region15: #{iou_loss.1} parent=0 // pred_check_branch
    %218 = sbr.rel (0) target = $region17
  $region16: #{iou_loss.1} parent=0 // pred_region
    _
  $region17: #{iou_loss.1} parent=0 // pred_fallthru
    _
  // Predicated region
  $region18: #{iou_loss.1} parent=0 // pred_check
    _
  $region19: #{iou_loss.1} parent=0 // pred_check_branch
    %220 = sbr.rel (0) target = $region21
  $region20: #{iou_loss.1} parent=0 // pred_region
    _
  $region21: #{iou_loss.1} parent=0 // pred_fallthru
    _
  // Predicated region
  $region22: #{iou_loss.1} parent=0 // pred_check
    _
  $region23: #{iou_loss.1} parent=0 // pred_check_branch
    %222 = sbr.rel (0) target = $region25
  $region24: #{iou_loss.1} parent=0 // pred_region
    _
  $region25: #{iou_loss.1} parent=0 // pred_fallthru
    _
  // Predicated region
  $region26: #{iou_loss.1} parent=0 // pred_check
    _
  $region27: #{iou_loss.1} parent=0 // pred_check_branch
    %224 = sbr.rel (0) target = $region29
  $region28: #{iou_loss.1} parent=0 // pred_region
    _
  $region29: #{iou_loss.1} parent=0 // pred_fallthru
    _
  // Predicated region
  $region30: #{iou_loss.1} parent=0 // pred_check
    _
  $region31: #{iou_loss.1} parent=0 // pred_check_branch
    %226 = sbr.rel (0) target = $region33
  $region32: #{iou_loss.1} parent=0 // pred_region
    _
  $region33: #{iou_loss.1} parent=0 // pred_fallthru
    _
  // Predicated region
  $region34: #{iou_loss.1} parent=0 // pred_check
    _
  $region35: #{iou_loss.1} parent=0 // pred_check_branch
    %228 = sbr.rel (0) target = $region37
  $region36: #{iou_loss.1} parent=0 // pred_region
    _
  $region37: #{iou_loss.1} parent=0 // pred_fallthru
    _

</llo_original>
